<compile_context>
chip_gen: v6e
topology: v6e:2x2x1
jax: 0.10.0
libtpu: 0.0.40
codegen_flags: <defaults>
</compile_context>

<pallas_src>
from functools import partial

import jax
import jax.numpy as jnp
from jax.experimental import pallas as pl
from jax.experimental.pallas import tpu as pltpu


def _round_up(x, m):
    return (x + m - 1) // m * m


def _cdiv(a, b):
    return -(-a // b)


def _choose_block_b(B, T, d, h, in_itemsize, out_itemsize, *,
                    target_steps=8, n_imu_buffers=2,
                    vmem_working_budget=18 * 1024 * 1024):
    """Pick the per-grid-step batch block.

    The budget covers the pipeline buffers AND the f32 intermediates alive inside
    one step (kimu / tanh activations / weighted-sum transient), so a large block
    cannot silently flip the kernel into spill territory (v5e scoped default is
    16 MiB, v7x has only 64 MiB physical VMEM per core).  We also require at least
    `target_steps` grid steps when the batch allows, so the BlockSpec pipeline has
    a steady state and the slab DMA overlaps compute.
    """
    per_row = (
        T * d * in_itemsize * n_imu_buffers   # imu slab, double/triple buffered
        + 3 * T * h * 4                       # kimu + tanh + elementwise f32 transients
        + T * d * 4                           # weighted-sum f32 transient
        + d * in_itemsize * 2                 # v block, double buffered
        + d * out_itemsize * 2                # output block, double buffered
        + 64                                  # softmax temporaries / slack
    )
    max_bb = max(8, (vmem_working_budget // per_row) // 8 * 8)

    # >= target_steps steps (>= 4 per TensorCore on v7x) when B is big enough.
    bb_for_steps = max(8, (B // target_steps) // 8 * 8)
    block_b = max(8, min(max_bb, bb_for_steps))

    # Best-effort nudge to an even step count so the two v7x TCs stay balanced.
    steps = _cdiv(B, block_b)
    if steps > 1 and steps % 2 == 1:
        alt = max(8, _round_up(_cdiv(B, steps + 1), 8))
        if alt <= max_bb and _cdiv(B, alt) % 2 == 0:
            block_b = alt
    return block_b


def _imu_attention_kernel(v_ref, imu_ref, wq_ref, wk_ref, we_ref, o_ref, *,
                          approx_recip: bool):
    # v_ref  : (bb, d)      block of query rows
    # imu_ref: (bb, t, d)   block of IMU embeddings
    # wq_ref : (d, h), wk_ref: (d, h)   pre-transposed Linear weights
    # we_ref : (1, h)       kept as a row -> VPU multiply + lane reduce
    # o_ref  : (bb, d)
    bb, t, d = imu_ref.shape
    h = wq_ref.shape[1]

    v = v_ref[...]                                                      # (bb, d)
    imu = imu_ref[...]                                                  # (bb, t, d)

    # Projections on the MXU with f32 accumulation.  The k-projection is a single
    # large-M matmul over all bb*t rows.
    # TODO(synk): replace the reshape pair with a direct 'btd,dh->bth' contraction
    # once Mosaic's dot_general supports a non-batched rank-3 lhs; for f32 inputs
    # with t a multiple of the sublane tile the reshape is a layout no-op, and any
    # relayout it forces is VMEM-internal (not extra HBM traffic).
    qv = jnp.dot(v, wq_ref[...], preferred_element_type=jnp.float32)    # (bb, h)
    kimu = jnp.dot(imu.reshape(bb * t, d), wk_ref[...],
                   preferred_element_type=jnp.float32).reshape(bb, t, h)

    # tanh runs on the EUP (separate bundle slot); math stays f32 (v5e has no
    # bf16 VPU/EUP).
    s = jnp.tanh(qv.reshape(bb, 1, h) + kimu)                           # (bb, t, h)

    # e-projection: VPU multiply + lane reduce instead of an N=1 MXU matmul.
    we_row = we_ref[...].astype(jnp.float32).reshape(1, 1, h)
    a = jnp.sum(s * we_row, axis=-1, keepdims=True)                     # (bb, t, 1)

    # Numerically stable softmax over the IMU-sample axis t (PyTorch dim=1).
    # Kept in the (bb, t, 1) layout: the score tensor is tiny (<= bb*t elements),
    # and staying 3-D avoids a lanes->sublanes relayout of w before the weighted
    # sum; the heavy work is the matmuls / tanh / weighted sum, not this chain.
    a = a - jnp.max(a, axis=1, keepdims=True)
    ea = jnp.exp(a)
    denom = jnp.sum(ea, axis=1, keepdims=True)
    w = ea * pl.reciprocal(denom, approx=approx_recip)                  # (bb, t, 1) f32

    # Weighted sum over t with f32 accumulation.  The multiply stays in the input
    # dtype (bf16 on the DMA-optimised default path) so no f32 copy of the imu
    # slab is materialised; the upcast happens inside the reduction.
    out = jnp.sum(w.astype(imu.dtype) * imu, axis=1, dtype=jnp.float32)  # (bb, d)
    o_ref[...] = out.astype(o_ref.dtype)


def imu_attention(v, imu, wq, wk, we, *, block_b=None,
                  input_dtype=jnp.bfloat16, approx_reciprocal=False,
                  imu_buffer_count=None):
    """IMUAttention forward.

    v   : [B, d]      query features (rows of v_delta, B = video_batch * frames)
    imu : [B, T, d]   per-row IMU embeddings (T = IMU samples per frame)
    wq, wk : [h, d]   PyTorch Linear weights (out, in), bias-free
    we  : [1, h]
    input_dtype : storage/MXU-input dtype for v/imu/weights.  Default bf16 halves
        the dominant HBM->VMEM DMA bytes (the kernel is mem-bound on the imu slab);
        accumulation/elementwise math is f32 regardless.  Pass None (or f32) for
        exact parity with the PyTorch module.
    approx_reciprocal : opt-in EUP approximate reciprocal for the softmax denom.
    imu_buffer_count  : optional pipeline depth for the imu slab (pl.Buffered(n));
        leave None unless a profile shows DMA gaps between steps.
    """
    out_dtype = v.dtype
    B, d = v.shape
    _, T, _ = imu.shape
    h = wq.shape[0]

    if input_dtype is not None:
        v = v.astype(input_dtype)
        imu = imu.astype(input_dtype)
        wq = wq.astype(input_dtype)
        wk = wk.astype(input_dtype)
        we = we.astype(input_dtype)

    # Glue: pre-transpose weights to [in, out] so the kernel does row-major matmuls.
    wq_t = jnp.asarray(wq).T                    # (d, h)
    wk_t = jnp.asarray(wk).T                    # (d, h)
    we_r = jnp.asarray(we)                      # (1, h) kept as a row

    in_itemsize = jnp.dtype(imu.dtype).itemsize
    out_itemsize = jnp.dtype(out_dtype).itemsize
    n_buf = imu_buffer_count if imu_buffer_count is not None else 2
    if block_b is None:
        block_b = _choose_block_b(B, T, d, h, in_itemsize, out_itemsize,
                                  n_imu_buffers=n_buf)

    b_pad = _round_up(B, block_b)
    if b_pad != B:
        # Zero padding is safe: padded rows produce a uniform softmax over zeros and
        # a zero output row, and are sliced away below.  NOTE: this relies on the
        # projections being bias-free (as in the PyTorch module).
        v = jnp.pad(v, ((0, b_pad - B), (0, 0)))
        imu = jnp.pad(imu, ((0, b_pad - B), (0, 0), (0, 0)))

    grid = (b_pad // block_b,)

    imu_spec_kwargs = {}
    if imu_buffer_count is not None and imu_buffer_count != 2:
        imu_spec_kwargs["pipeline_mode"] = pl.Buffered(imu_buffer_count)

    out = pl.pallas_call(
        partial(_imu_attention_kernel, approx_recip=approx_reciprocal),
        out_shape=jax.ShapeDtypeStruct((b_pad, d), out_dtype),
        grid_spec=pltpu.PrefetchScalarGridSpec(
            num_scalar_prefetch=0,
            grid=grid,
            in_specs=[
                pl.BlockSpec((block_b, d), lambda b: (b, 0)),                        # v rows
                pl.BlockSpec((block_b, T, d), lambda b: (b, 0, 0), **imu_spec_kwargs),  # imu slab
                pl.BlockSpec((d, h), lambda b: (0, 0)),                              # Wq^T (resident)
                pl.BlockSpec((d, h), lambda b: (0, 0)),                              # Wk^T (resident)
                pl.BlockSpec((1, h), lambda b: (0, 0)),                              # We row (resident)
            ],
            out_specs=pl.BlockSpec((block_b, d), lambda b: (b, 0)),
        ),
        compiler_params=pltpu.CompilerParams(
            dimension_semantics=("parallel",),
            # Above v5e's 16 MiB scoped default, equal to v6e/v7x defaults, and well
            # under v7x's 64 MiB physical per core; the working set is budgeted to
            # ~18 MiB in _choose_block_b, leaving headroom.
            vmem_limit_bytes=32 * 1024 * 1024,
        ),
    )(v, imu, wq_t, wk_t, we_r)

    return out[:B]


def _reference(v, imu, wq, wk, we):
    # Pure-JAX reference mirroring the PyTorch IMUAttention.forward exactly.
    qv = v @ wq.T                                   # [B, h]
    kimu = imu @ wk.T                               # [B, T, h]
    a = jnp.tanh(qv[:, None, :] + kimu) @ we.T      # [B, T, 1]
    w = jax.nn.softmax(a, axis=1)
    return (w * imu).sum(axis=1)                    # [B, d]


if __name__ == "__main__":
    # Small shapes consistent with VIOCNN: IMUAttention runs on N = B*T flattened
    # (video batch * frames) rows of v_delta, each attending over M IMU samples,
    # at emb_dim d and hidden h.
    B_vid, T_frames, M, d, h = 2, 8, 8, 32, 32
    N = B_vid * T_frames  # 16 attention rows

    key = jax.random.PRNGKey(0)
    kv, ki, kq, kk, ke = jax.random.split(key, 5)

    v = jax.random.normal(kv, (N, d), dtype=jnp.float32)
    imu = jax.random.normal(ki, (N, M, d), dtype=jnp.float32)

    # Deterministic "Linear(bias=False)"-style weights, PyTorch [out, in] layout.
    bq = 1.0 / jnp.sqrt(d)
    be = 1.0 / jnp.sqrt(h)
    wq = jax.random.uniform(kq, (h, d), jnp.float32, -bq, bq)
    wk = jax.random.uniform(kk, (h, d), jnp.float32, -bq, bq)
    we = jax.random.uniform(ke, (1, h), jnp.float32, -be, be)

    ref = _reference(v, imu, wq, wk, we)

    # Exact path: f32 storage + exact reciprocal -> tight match to the PyTorch math.
    out_exact = jax.block_until_ready(
        imu_attention(v, imu, wq, wk, we, input_dtype=None))
    assert out_exact.shape == (N, d)
    assert jnp.allclose(out_exact, ref, atol=1e-5, rtol=1e-5), "exact path mismatch"

    # Default path: bf16 HBM/MXU-input (half the DMA bytes on v6e/v7x), f32 math.
    out_default = jax.block_until_ready(imu_attention(v, imu, wq, wk, we))
    assert out_default.shape == (N, d)
    assert jnp.allclose(out_default, ref, atol=5e-2, rtol=5e-2), "bf16 default mismatch"

    # Opt-in approx EUP reciprocal for the softmax denominator.
    out_fast = jax.block_until_ready(
        imu_attention(v, imu, wq, wk, we, input_dtype=None, approx_reciprocal=True))
    assert jnp.allclose(out_fast, ref, atol=1e-3, rtol=1e-3), "approx-recip mismatch"

    print("KERNEL_OK")
</pallas_src>

<mosaic_0001>
module attributes {stable_mosaic.version = 11 : i64} {
  func.func @_imu_attention_kernel(%arg0: i32, %arg1: memref<8x32xf32, #tpu.memory_space<vmem>>, %arg2: memref<8x8x32xf32, #tpu.memory_space<vmem>>, %arg3: memref<32x32xf32, #tpu.memory_space<vmem>>, %arg4: memref<32x32xf32, #tpu.memory_space<vmem>>, %arg5: memref<1x32xf32, #tpu.memory_space<vmem>>, %arg6: memref<8x32xf32, #tpu.memory_space<vmem>>) attributes {dimension_semantics = [#tpu.dimension_semantics<parallel>], iteration_bounds = array<i64: 2>, scalar_prefetch = 0 : i64, scratch_operands = 0 : i64, tpu.core_type = #tpu.core_type<tc>, window_params = [{transform_indices = @transform_0, window_bounds = array<i64: 8, 32>}, {transform_indices = @transform_1, window_bounds = array<i64: 8, 8, 32>}, {pipeline_mode = #tpu.pipeline_mode<synchronous>, transform_indices = @transform_2, window_bounds = array<i64: 32, 32>}, {pipeline_mode = #tpu.pipeline_mode<synchronous>, transform_indices = @transform_3, window_bounds = array<i64: 32, 32>}, {pipeline_mode = #tpu.pipeline_mode<synchronous>, transform_indices = @transform_4, window_bounds = array<i64: 1, 32>}, {transform_indices = @transform_5, window_bounds = array<i64: 8, 32>}]} {
    %c0 = arith.constant 0 : index
    %c0_0 = arith.constant 0 : index
    %0 = vector.load %arg1[%c0, %c0_0] : memref<8x32xf32, #tpu.memory_space<vmem>>, vector<8x32xf32>
    %c0_1 = arith.constant 0 : index
    %c0_2 = arith.constant 0 : index
    %c0_3 = arith.constant 0 : index
    %1 = vector.load %arg2[%c0_1, %c0_2, %c0_3] : memref<8x8x32xf32, #tpu.memory_space<vmem>>, vector<8x8x32xf32>
    %c0_4 = arith.constant 0 : index
    %c0_5 = arith.constant 0 : index
    %2 = vector.load %arg3[%c0_4, %c0_5] : memref<32x32xf32, #tpu.memory_space<vmem>>, vector<32x32xf32>
    %cst = arith.constant dense<0.000000e+00> : vector<8x32xf32>
    %3 = tpu.matmul %0, %2, %cst {dimension_numbers = #tpu.dot_dimension_numbers<[1], [0], [0], [1], [0, 0, 1, 1], [], []>} : vector<8x32xf32>, vector<32x32xf32>, vector<8x32xf32> -> vector<8x32xf32>
    %4 = vector.shape_cast %1 : vector<8x8x32xf32> to vector<64x32xf32>
    %c0_6 = arith.constant 0 : index
    %c0_7 = arith.constant 0 : index
    %5 = vector.load %arg4[%c0_6, %c0_7] : memref<32x32xf32, #tpu.memory_space<vmem>>, vector<32x32xf32>
    %cst_8 = arith.constant dense<0.000000e+00> : vector<64x32xf32>
    %6 = tpu.matmul %4, %5, %cst_8 {dimension_numbers = #tpu.dot_dimension_numbers<[1], [0], [0], [1], [0, 0, 1, 1], [], []>} : vector<64x32xf32>, vector<32x32xf32>, vector<64x32xf32> -> vector<64x32xf32>
    %7 = vector.shape_cast %6 : vector<64x32xf32> to vector<8x8x32xf32>
    %8 = vector.shape_cast %3 : vector<8x32xf32> to vector<8x1x32xf32>
    %9 = vector.broadcast %8 : vector<8x1x32xf32> to vector<8x8x32xf32>
    %10 = arith.addf %9, %7 : vector<8x8x32xf32>
    %11 = math.tanh %10 : vector<8x8x32xf32>
    %c0_9 = arith.constant 0 : index
    %c0_10 = arith.constant 0 : index
    %12 = vector.load %arg5[%c0_9, %c0_10] : memref<1x32xf32, #tpu.memory_space<vmem>>, vector<1x32xf32>
    %13 = vector.shape_cast %12 : vector<1x32xf32> to vector<1x1x32xf32>
    %14 = vector.broadcast %13 : vector<1x1x32xf32> to vector<8x8x32xf32>
    %15 = arith.mulf %11, %14 : vector<8x8x32xf32>
    %cst_11 = arith.constant dense<0.000000e+00> : vector<8x8xf32>
    %16 = vector.multi_reduction <add>, %15, %cst_11 [2] : vector<8x8x32xf32> to vector<8x8xf32>
    %17 = vector.shape_cast %16 : vector<8x8xf32> to vector<8x8x1xf32>
    %cst_12 = arith.constant dense<0xFF800000> : vector<8x1xf32>
    %18 = vector.multi_reduction <maximumf>, %17, %cst_12 [1] : vector<8x8x1xf32> to vector<8x1xf32>
    %19 = vector.shape_cast %18 : vector<8x1xf32> to vector<8x1x1xf32>
    %20 = vector.broadcast %19 : vector<8x1x1xf32> to vector<8x8x1xf32>
    %21 = arith.subf %17, %20 : vector<8x8x1xf32>
    %22 = math.exp %21 : vector<8x8x1xf32>
    %cst_13 = arith.constant dense<0.000000e+00> : vector<8x1xf32>
    %23 = vector.multi_reduction <add>, %22, %cst_13 [1] : vector<8x8x1xf32> to vector<8x1xf32>
    %24 = vector.shape_cast %23 : vector<8x1xf32> to vector<8x1x1xf32>
    %25 = tpu.reciprocal %24 : vector<8x1x1xf32> -> vector<8x1x1xf32>
    %26 = vector.broadcast %25 : vector<8x1x1xf32> to vector<8x8x1xf32>
    %27 = arith.mulf %22, %26 : vector<8x8x1xf32>
    %28 = vector.broadcast %27 : vector<8x8x1xf32> to vector<8x8x32xf32>
    %29 = arith.mulf %28, %1 : vector<8x8x32xf32>
    %cst_14 = arith.constant dense<0.000000e+00> : vector<8x32xf32>
    %30 = vector.multi_reduction <add>, %29, %cst_14 [1] : vector<8x8x32xf32> to vector<8x32xf32>
    %c0_15 = arith.constant 0 : index
    %c0_16 = arith.constant 0 : index
    %31 = vector.load %arg6[%c0_15, %c0_16] : memref<8x32xf32, #tpu.memory_space<vmem>>, vector<8x32xf32>
    tpu.vector_store %arg6[%c0_15, %c0_16], %30 {strides = array<i32>} : memref<8x32xf32, #tpu.memory_space<vmem>>, vector<8x32xf32>,
    return
  }
  func.func @transform_0(%arg0: i32) -> (i32, i32) {
    %c0_i32 = arith.constant 0 : i32
    %c0_i32_0 = arith.constant 0 : i32
    return %arg0, %c0_i32 : i32, i32
  }
  func.func @transform_1(%arg0: i32) -> (i32, i32, i32) {
    %c0_i32 = arith.constant 0 : i32
    %c0_i32_0 = arith.constant 0 : i32
    %c0_i32_1 = arith.constant 0 : i32
    return %arg0, %c0_i32, %c0_i32_0 : i32, i32, i32
  }
  func.func @transform_2(%arg0: i32) -> (i32, i32) {
    %c0_i32 = arith.constant 0 : i32
    %c0_i32_0 = arith.constant 0 : i32
    %c0_i32_1 = arith.constant 0 : i32
    return %c0_i32, %c0_i32_0 : i32, i32
  }
  func.func @transform_3(%arg0: i32) -> (i32, i32) {
    %c0_i32 = arith.constant 0 : i32
    %c0_i32_0 = arith.constant 0 : i32
    %c0_i32_1 = arith.constant 0 : i32
    return %c0_i32, %c0_i32_0 : i32, i32
  }
  func.func @transform_4(%arg0: i32) -> (i32, i32) {
    %c0_i32 = arith.constant 0 : i32
    %c0_i32_0 = arith.constant 0 : i32
    %c0_i32_1 = arith.constant 0 : i32
    return %c0_i32, %c0_i32_0 : i32, i32
  }
  func.func @transform_5(%arg0: i32) -> (i32, i32) {
    %c0_i32 = arith.constant 0 : i32
    %c0_i32_0 = arith.constant 0 : i32
    return %arg0, %c0_i32 : i32, i32
  }
}

</mosaic_0001>

<llo_original>
// kernel: tpu_custom_call.1
$region0: #{tpu_custom_call.1}
  #allocation0 [shape = 'u32[]', space=smem, size = 0x4, offset = 0x4, fixed_abs, tag = 'smem constant byte address 0x4 - core index']
  #allocation1 [shape = 'u32[144,128]{1,0:T(1,128)}', space=vmem, size = 0x12000, scoped, tag = 'internal scratch']
  %s0 = inlined_call_operand.hbm [shape: f32[16,32], index: 0, kind: input, shape index: {}]
  %s1 = inlined_call_operand.hbm [shape: f32[16,8,32], index: 1, kind: input, shape index: {}]
  %s2 = inlined_call_operand.hbm [shape: f32[32,32], index: 2, kind: input, shape index: {}]
  %s3 = inlined_call_operand.hbm [shape: f32[32,32], index: 3, kind: input, shape index: {}]
  %s4 = inlined_call_operand.vmem [shape: f32[1,32], index: 4, kind: input, shape index: {}]
  %s5 = inlined_call_operand.hbm [shape: f32[16,32], index: 5, kind: output, shape index: {}]
  %s6 = sld [smem:[#allocation0]]
  $region69: #{tpu_custom_call.1} parent=0
    _
  %s8 = ssub.s32 1, %s6
  %s9 = scalar_select 0, %s8, %s6
  $region1: #{tpu_custom_call.1} parent=0
    #allocation2 [shape = 'u8[8192]{0}', space=vmem, size = 0x2000, scoped, tag = 'input window, operand 0']
    #allocation3 [shape = 's32[2]{0}', space=sflag, size = 0x8, scoped, tag = 'scoped memory for tpu_custom_call.1']
    #allocation4 [shape = 's32[2]{0}', space=sflag, size = 0x8, scoped, tag = 'scoped memory for tpu_custom_call.1']
    #allocation5 [shape = 'u8[65536]{0}', space=vmem, size = 0x10000, scoped, tag = 'input window, operand 1']
    #allocation6 [shape = 's32[2]{0}', space=sflag, size = 0x8, scoped, tag = 'scoped memory for tpu_custom_call.1']
    #allocation7 [shape = 'u8[16384]{0}', space=vmem, size = 0x4000, scoped, tag = 'input window, operand 2, single buffered']
    #allocation8 [shape = 'u8[16384]{0}', space=vmem, size = 0x4000, scoped, tag = 'input window, operand 3, single buffered']
    #allocation9 [shape = 's32[1]{0}', space=sflag, size = 0x4, scoped, tag = 'scoped memory for tpu_custom_call.1']
    #allocation10 [shape = 'u8[8192]{0}', space=vmem, size = 0x2000, scoped, tag = 'output window, operand 0']
    %10 = vsyncpa [#allocation3], 0
    %s11 = scalar_lea.sflag [#allocation3], 1
    %12 = vsyncpa %s11, 0
    %13 = vsyncpa [#allocation6], 0
    %s14 = scalar_lea.sflag [#allocation6], 1
    %15 = vsyncpa %s14, 0
    %16 = vsyncpa [#allocation9], 0
    %17 = vsyncpa [#allocation4], 0
    %s18 = scalar_lea.sflag [#allocation4], 1
    %19 = vsyncpa %s18, 0
    loop: start=0, step=1, limit=4
    $region2: #{tpu_custom_call.1} parent=1 // loop_pre_header
      _
    $region3: #{tpu_custom_call.1} parent=1 // loop_header
      %s21 = sphi 0, %s25
      %p22 = scmp.ge.s32.totalorder %s21, 4
      %s31 = sphi 0, %s33
      %s34 = sphi 0, %s31
      %s35 = sphi 0, %s34
      %s51 = sphi 0, %s35
      %s57 = sphi 0, %s59
      %s60 = sphi 0, %s57
      %s61 = sphi 0, %s60
      %s77 = sphi 0, %s61
      %s81 = sphi 0, %s81
      %s83 = sphi 0, %s81
      %s84 = sphi 0, %s83
      %s98 = sphi 0, %s84
      %s102 = sphi 0, %s102
      %s104 = sphi 0, %s102
      %s105 = sphi 0, %s104
      %s119 = sphi 0, %s105
      %s123 = sphi 0, %s123
      %s125 = sphi 0, %s123
      %s126 = sphi 0, %s125
      %s140 = sphi 0, %s126
      %s146 = sphi 0, %s148
      %s149 = sphi 0, %s146
      %s150 = sphi 0, %s149
      %s166 = sphi 0, %s150
    $region4: #{tpu_custom_call.1} parent=1 // loop_header_branch
      %24 = sbr.rel (%p22) target = $region8
    $region5: #{tpu_custom_call.1} parent=1 // loop_body
      %s26 = ssub.s32 %s21, 1
      %s27 = ssub.s32 %s21, 2
      %s28 = sadd.s32 %s21, 1
      %s29 = ssub.s32 %s21, %s28
      %p30 = scmp.eq.s32.totalorder %s29, 0
      %s32 = sadd.s32 %s31, 1
      %s33 = scalar_select %p30, %s31, %s32
      %p36 = pneg %p30
      %p37 = scmp.eq.s32.totalorder %s21, 1
      %p38 = por %p36, %p37
      %p39 = scmp.ne.s32.totalorder %s31, %s34
      %p40 = scmp.eq.s32.totalorder %s21, 0
      %p41 = por %p39, %p40
      %p42 = scmp.ne.s32.totalorder %s31, %s34
      %p43 = scmp.eq.s32.totalorder %s26, 1
      %p44 = por %p42, %p43
      %p45 = scmp.ne.s32.totalorder %s34, %s35
      %p46 = scmp.eq.s32.totalorder %s26, 0
      %p47 = por %p45, %p46
      %p48 = scmp.ne.s32.totalorder %s34, %s35
      %p49 = scmp.eq.s32.totalorder %s27, 1
      %p50 = por %p48, %p49
      %p52 = scmp.ne.s32.totalorder %s35, %s51
      %p53 = scmp.eq.s32.totalorder %s27, 0
      %p54 = por %p52, %p53
      %s55 = ssub.s32 %s21, %s28
      %p56 = scmp.eq.s32.totalorder %s55, 0
      %s58 = sadd.s32 %s57, 1
      %s59 = scalar_select %p56, %s57, %s58
      %p62 = pneg %p56
      %p63 = scmp.eq.s32.totalorder %s21, 1
      %p64 = por %p62, %p63
      %p65 = scmp.ne.s32.totalorder %s57, %s60
      %p66 = scmp.eq.s32.totalorder %s21, 0
      %p67 = por %p65, %p66
      %p68 = scmp.ne.s32.totalorder %s57, %s60
      %p69 = scmp.eq.s32.totalorder %s26, 1
      %p70 = por %p68, %p69
      %p71 = scmp.ne.s32.totalorder %s60, %s61
      %p72 = scmp.eq.s32.totalorder %s26, 0
      %p73 = por %p71, %p72
      %p74 = scmp.ne.s32.totalorder %s60, %s61
      %p75 = scmp.eq.s32.totalorder %s27, 1
      %p76 = por %p74, %p75
      %p78 = scmp.ne.s32.totalorder %s61, %s77
      %p79 = scmp.eq.s32.totalorder %s27, 0
      %p80 = por %p78, %p79
      %s82 = sadd.s32 %s81, 1
      %p85 = scmp.eq.s32.totalorder %s21, 1
      %p86 = scmp.ne.s32.totalorder %s81, %s83
      %p87 = scmp.eq.s32.totalorder %s21, 0
      %p88 = por %p86, %p87
      %p89 = scmp.ne.s32.totalorder %s81, %s83
      %p90 = scmp.eq.s32.totalorder %s26, 1
      %p91 = por %p89, %p90
      %p92 = scmp.ne.s32.totalorder %s83, %s84
      %p93 = scmp.eq.s32.totalorder %s26, 0
      %p94 = por %p92, %p93
      %p95 = scmp.ne.s32.totalorder %s83, %s84
      %p96 = scmp.eq.s32.totalorder %s27, 1
      %p97 = por %p95, %p96
      %p99 = scmp.ne.s32.totalorder %s84, %s98
      %p100 = scmp.eq.s32.totalorder %s27, 0
      %p101 = por %p99, %p100
      %s103 = sadd.s32 %s102, 1
      %p106 = scmp.eq.s32.totalorder %s21, 1
      %p107 = scmp.ne.s32.totalorder %s102, %s104
      %p108 = scmp.eq.s32.totalorder %s21, 0
      %p109 = por %p107, %p108
      %p110 = scmp.ne.s32.totalorder %s102, %s104
      %p111 = scmp.eq.s32.totalorder %s26, 1
      %p112 = por %p110, %p111
      %p113 = scmp.ne.s32.totalorder %s104, %s105
      %p114 = scmp.eq.s32.totalorder %s26, 0
      %p115 = por %p113, %p114
      %p116 = scmp.ne.s32.totalorder %s104, %s105
      %p117 = scmp.eq.s32.totalorder %s27, 1
      %p118 = por %p116, %p117
      %p120 = scmp.ne.s32.totalorder %s105, %s119
      %p121 = scmp.eq.s32.totalorder %s27, 0
      %p122 = por %p120, %p121
      %s124 = sadd.s32 %s123, 1
      %p127 = scmp.eq.s32.totalorder %s21, 1
      %p128 = scmp.ne.s32.totalorder %s123, %s125
      %p129 = scmp.eq.s32.totalorder %s21, 0
      %p130 = por %p128, %p129
      %p131 = scmp.ne.s32.totalorder %s123, %s125
      %p132 = scmp.eq.s32.totalorder %s26, 1
      %p133 = por %p131, %p132
      %p134 = scmp.ne.s32.totalorder %s125, %s126
      %p135 = scmp.eq.s32.totalorder %s26, 0
      %p136 = por %p134, %p135
      %p137 = scmp.ne.s32.totalorder %s125, %s126
      %p138 = scmp.eq.s32.totalorder %s27, 1
      %p139 = por %p137, %p138
      %p141 = scmp.ne.s32.totalorder %s126, %s140
      %p142 = scmp.eq.s32.totalorder %s27, 0
      %p143 = por %p141, %p142
      %s144 = ssub.s32 %s21, %s28
      %p145 = scmp.eq.s32.totalorder %s144, 0
      %s147 = sadd.s32 %s146, 1
      %s148 = scalar_select %p145, %s146, %s147
      %p151 = pneg %p145
      %p152 = scmp.eq.s32.totalorder %s21, 1
      %p153 = por %p151, %p152
      %p154 = scmp.ne.s32.totalorder %s146, %s149
      %p155 = scmp.eq.s32.totalorder %s21, 0
      %p156 = por %p154, %p155
      %p157 = scmp.ne.s32.totalorder %s146, %s149
      %p158 = scmp.eq.s32.totalorder %s26, 1
      %p159 = por %p157, %p158
      %p160 = scmp.ne.s32.totalorder %s149, %s150
      %p161 = scmp.eq.s32.totalorder %s26, 0
      %p162 = por %p160, %p161
      %p163 = scmp.ne.s32.totalorder %s149, %s150
      %p164 = scmp.eq.s32.totalorder %s27, 1
      %p165 = por %p163, %p164
      %p167 = scmp.ne.s32.totalorder %s150, %s166
      %p168 = scmp.eq.s32.totalorder %s27, 0
      %p169 = por %p167, %p168
      %p170 = scmp.le.s32.totalorder 1, %s21
      %p171 = scmp.lt.s32.totalorder %s21, 3
      %p172 = pnand %p170, %p171
      %p173 = pneg %p172
      // Predicated region
      $region9: #{tpu_custom_call.1} parent=5 // pred_check
        _
      $region10: #{tpu_custom_call.1} parent=5 // pred_check_branch
        %175 = sbr.rel (%p172) target = $region12
      $region11: #{tpu_custom_call.1} parent=5 // pred_region
        %s176 = ssub.s32 %s21, 1
        // Predicated region
        $region13: #{tpu_custom_call.1} parent=11 // pred_check
          %p177 = pneg %p94
        $region14: #{tpu_custom_call.1} parent=11 // pred_check_branch
          %179 = sbr.rel (%p177) target = $region16
        $region15: #{tpu_custom_call.1} parent=11 // pred_region
          %s181 = ssub.s32 512, 512
          %182 = vsyncadd [#allocation6], %s181
          %s183 = sshll.u32 [#allocation7], 4
          %s184 = int_to_ptr.vmem [resolvable:$true] %s183
          %189 = dma.hbm_to_vmem [thread:$0]  %s2, 512, %s184, [#allocation6], 128, 128, 8
        $region16: #{tpu_custom_call.1} parent=11 // pred_fallthru
          _
        // Predicated region
        $region17: #{tpu_custom_call.1} parent=11 // pred_check
          %p190 = pneg %p115
        $region18: #{tpu_custom_call.1} parent=11 // pred_check_branch
          %192 = sbr.rel (%p190) target = $region20
        $region19: #{tpu_custom_call.1} parent=11 // pred_region
          %s194 = ssub.s32 512, 512
          %195 = vsyncadd [#allocation9], %s194
          %s196 = sshll.u32 [#allocation8], 4
          %s197 = int_to_ptr.vmem [resolvable:$true] %s196
          %202 = dma.hbm_to_vmem [thread:$0]  %s3, 512, %s197, [#allocation9], 128, 128, 8
        $region20: #{tpu_custom_call.1} parent=11 // pred_fallthru
          _
        // Predicated region
        $region21: #{tpu_custom_call.1} parent=11 // pred_check
          %p203 = pneg %p136
        $region22: #{tpu_custom_call.1} parent=11 // pred_check_branch
          %205 = sbr.rel (%p203) target = $region24
        $region23: #{tpu_custom_call.1} parent=11 // pred_region
          _
        $region24: #{tpu_custom_call.1} parent=11 // pred_fallthru
          _
      $region12: #{tpu_custom_call.1} parent=5 // pred_fallthru
        _
      %p206 = scmp.lt.s32.totalorder %s21, 2
      // Predicated region
      $region25: #{tpu_custom_call.1} parent=5 // pred_check
        %p207 = pneg %p206
      $region26: #{tpu_custom_call.1} parent=5 // pred_check_branch
        %209 = sbr.rel (%p207) target = $region28
      $region27: #{tpu_custom_call.1} parent=5 // pred_region
        // Predicated region
        $region29: #{tpu_custom_call.1} parent=27 // pred_check
          %p210 = pneg %p41
        $region30: #{tpu_custom_call.1} parent=27 // pred_check_branch
          %212 = sbr.rel (%p210) target = $region32
        $region31: #{tpu_custom_call.1} parent=27 // pred_region
          %s213 = sand.u32 %s31, 1
          %s214 = scalar_lea.sflag [#allocation3], %s213
          %s215 = sand.u32 %s31, 1
          %s216 = smul.addr %s215, 8
          %s217 = scalar_lea.vmem [#allocation2], %s216
          %s219 = ssub.s32 128, 128
          %220 = vsyncadd %s214, %s219
          %s221 = smul.addr %s21, 128
          %s222 = scalar_lea.hbm %s0, %s221
          %s224 = sshll.u32 %s217, 4
          %s225 = int_to_ptr.vmem [resolvable:$true] %s224
          %227 = dma.hbm_to_vmem [thread:$0]  %s222, 128, %s225, %s214
        $region32: #{tpu_custom_call.1} parent=27 // pred_fallthru
          _
        // Predicated region
        $region33: #{tpu_custom_call.1} parent=27 // pred_check
          %p228 = pneg %p67
        $region34: #{tpu_custom_call.1} parent=27 // pred_check_branch
          %230 = sbr.rel (%p228) target = $region36
        $region35: #{tpu_custom_call.1} parent=27 // pred_region
          %s231 = sand.u32 %s21, 1
          %s232 = scalar_lea.sflag [#allocation6], %s231
          %s233 = sand.u32 %s57, 1
          %s234 = smul.addr %s233, 64
          %s235 = scalar_lea.vmem [#allocation5], %s234
          %s236 = smul.u32 8, %s21
          %s238 = ssub.s32 1024, 1024
          %239 = vsyncadd %s232, %s238
          %s240 = smul.addr %s236, 128
          %s241 = scalar_lea.hbm %s1, %s240
          %s242 = sshll.u32 %s235, 4
          %s243 = int_to_ptr.vmem [resolvable:$true] %s242
          %248 = dma.hbm_to_vmem [thread:$0]  %s241, 1024, %s243, %s232, 128, 128, 8
        $region36: #{tpu_custom_call.1} parent=27 // pred_fallthru
          _
      $region28: #{tpu_custom_call.1} parent=5 // pred_fallthru
        _
      %p249 = scmp.le.s32.totalorder 1, %s21
      %p250 = scmp.lt.s32.totalorder %s21, 3
      %p251 = pnand %p249, %p250
      %p252 = pneg %p251
      // Predicated region
      $region37: #{tpu_custom_call.1} parent=5 // pred_check
        _
      $region38: #{tpu_custom_call.1} parent=5 // pred_check_branch
        %254 = sbr.rel (%p251) target = $region40
      $region39: #{tpu_custom_call.1} parent=5 // pred_region
        %s255 = ssub.s32 %s21, 1
        %s256 = sand.u32 %s34, 1
        %s257 = scalar_lea.sflag [#allocation3], %s256
        %s258 = sand.u32 %s34, 1
        %s259 = smul.addr %s258, 8
        %s260 = scalar_lea.vmem [#allocation2], %s259
        // Predicated region
        $region41: #{tpu_custom_call.1} parent=39 // pred_check
          %p261 = pneg %p47
        $region42: #{tpu_custom_call.1} parent=39 // pred_check_branch
          %263 = sbr.rel (%p261) target = $region44
        $region43: #{tpu_custom_call.1} parent=39 // pred_region
          %264 = dma.done %s257, 128
        $region44: #{tpu_custom_call.1} parent=39 // pred_fallthru
          _
        %s265 = sand.u32 %s26, 1
        %s266 = scalar_lea.sflag [#allocation6], %s265
        %s267 = sand.u32 %s60, 1
        %s268 = smul.addr %s267, 64
        %s269 = scalar_lea.vmem [#allocation5], %s268
        // Predicated region
        $region45: #{tpu_custom_call.1} parent=39 // pred_check
          %p270 = pneg %p73
        $region46: #{tpu_custom_call.1} parent=39 // pred_check_branch
          %272 = sbr.rel (%p270) target = $region48
        $region47: #{tpu_custom_call.1} parent=39 // pred_region
          %273 = dma.done %s266, 1024
        $region48: #{tpu_custom_call.1} parent=39 // pred_fallthru
          _
        // Predicated region
        $region49: #{tpu_custom_call.1} parent=39 // pred_check
          %p274 = pneg %p94
        $region50: #{tpu_custom_call.1} parent=39 // pred_check_branch
          %276 = sbr.rel (%p274) target = $region52
        $region51: #{tpu_custom_call.1} parent=39 // pred_region
          %277 = dma.done [#allocation6], 512
        $region52: #{tpu_custom_call.1} parent=39 // pred_fallthru
          _
        // Predicated region
        $region53: #{tpu_custom_call.1} parent=39 // pred_check
          %p278 = pneg %p115
        $region54: #{tpu_custom_call.1} parent=39 // pred_check_branch
          %280 = sbr.rel (%p278) target = $region56
        $region55: #{tpu_custom_call.1} parent=39 // pred_region
          %281 = dma.done [#allocation9], 512
        $region56: #{tpu_custom_call.1} parent=39 // pred_fallthru
          _
        %s282 = sand.u32 %s34, 1
        %s283 = scalar_lea.sflag [#allocation3], %s282
        %s284 = sand.u32 %s34, 1
        %s285 = smul.addr %s284, 8
        %s286 = scalar_lea.vmem [#allocation2], %s285
        %p287 = pneg %p47
        %p288 = pneg %p44
        %s289 = sand.u32 %s26, 1
        %s290 = scalar_lea.sflag [#allocation6], %s289
        %s291 = sand.u32 %s60, 1
        %s292 = smul.addr %s291, 64
        %s293 = scalar_lea.vmem [#allocation5], %s292
        %p294 = pneg %p73
        %p295 = pneg %p70
        %p296 = pneg %p94
        %p297 = pneg %p91
        %p298 = pneg %p115
        %p299 = pneg %p112
        %p300 = pneg %p136
        %p301 = pneg %p133
        %p302 = pneg %p162
        %p303 = pneg %p159
        %s304 = sand.u32 %s149, 1
        %s305 = scalar_lea.sflag [#allocation4], %s304
        %s306 = sand.u32 %s149, 1
        %s307 = smul.addr %s306, 8
        %s308 = scalar_lea.vmem [#allocation10], %s307
        %s309 = smul.u32 8, %s26
        %v310 = vld [vmem:[%s260] sm:$0xff]
        %v311 = vld [vmem:[%s269] sm:$0xff]
        %v312 = vld [vmem:[%s269 + $0x8] sm:$0xff]
        %v313 = vld [vmem:[%s269 + $0x10] sm:$0xff]
        %v314 = vld [vmem:[%s269 + $0x18] sm:$0xff]
        %v315 = vld [vmem:[%s269 + $0x20] sm:$0xff]
        %v316 = vld [vmem:[%s269 + $0x28] sm:$0xff]
        %v317 = vld [vmem:[%s269 + $0x30] sm:$0xff]
        %v318 = vld [vmem:[%s269 + $0x38] sm:$0xff]
        %v319 = vld [vmem:[#allocation7] sm:$0xff]
        %v320 = vld [vmem:[#allocation7 + $0x8] sm:$0xff]
        %v321 = vld [vmem:[#allocation7 + $0x10] sm:$0xff]
        %v322 = vld [vmem:[#allocation7 + $0x18] sm:$0xff]
        %vm323 = vcmask 261120
        %v325 = vsel %vm323, %v310, 0
        %327 = vmatprep.subr.mxu0 0.0
        %328 = vmatpush1.msra.mxu0 0.0
        %329 = vmatprep.subr.mxu0 0.0
        %330 = vmatpush1.msra.mxu0 0.0
        %331 = vmatprep.subr.mxu0 0.0
        %332 = vmatpush1.msra.mxu0 0.0
        %333 = vmatprep.subr.mxu0 0.0
        %334 = vmatpush1.msra.mxu0 0.0
        %335 = vmatprep.subr.mxu0 0.0
        %336 = vmatpush1.msra.mxu0 0.0
        %337 = vmatprep.subr.mxu0 0.0
        %338 = vmatpush1.msra.mxu0 0.0
        %339 = vmatprep.subr.mxu0 0.0
        %340 = vmatpush1.msra.mxu0 0.0
        %341 = vmatprep.subr.mxu0 0.0
        %342 = vmatpush1.msra.mxu0 0.0
        %343 = vmatprep.subr.mxu0 0.0
        %344 = vmatpush1.msra.mxu0 0.0
        %345 = vmatprep.subr.mxu0 0.0
        %346 = vmatpush1.msra.mxu0 0.0
        %347 = vmatprep.subr.mxu0 0.0
        %348 = vmatpush1.msra.mxu0 0.0
        %349 = vmatprep.subr.mxu0 0.0
        %350 = vmatpush1.msra.mxu0 0.0
        %351 = vmatprep.subr.mxu0 0.0
        %352 = vmatpush1.msra.mxu0 %v322
        %353 = vmatprep.subr.mxu0 0.0
        %354 = vmatpush1.msra.mxu0 %v321
        %355 = vmatprep.subr.mxu0 0.0
        %356 = vmatpush1.msra.mxu0 %v320
        %357 = vmatprep.subr.mxu0 0.0
        %358 = vmatpush1.msra.mxu0 %v319
        %359 = vmatprep.subr.mxu0 0.0
        %360 = vmatpush2.msra.mxu0 0.0
        %361 = vmatprep.subr.mxu0 0.0
        %362 = vmatpush2.msra.mxu0 0.0
        %363 = vmatprep.subr.mxu0 0.0
        %364 = vmatpush2.msra.mxu0 0.0
        %365 = vmatprep.subr.mxu0 0.0
        %366 = vmatpush2.msra.mxu0 0.0
        %367 = vmatprep.subr.mxu0 0.0
        %368 = vmatpush2.msra.mxu0 0.0
        %369 = vmatprep.subr.mxu0 0.0
        %370 = vmatpush2.msra.mxu0 0.0
        %371 = vmatprep.subr.mxu0 0.0
        %372 = vmatpush2.msra.mxu0 0.0
        %373 = vmatprep.subr.mxu0 0.0
        %374 = vmatpush2.msra.mxu0 0.0
        %375 = vmatprep.subr.mxu0 0.0
        %376 = vmatpush2.msra.mxu0 0.0
        %377 = vmatprep.subr.mxu0 0.0
        %378 = vmatpush2.msra.mxu0 0.0
        %379 = vmatprep.subr.mxu0 0.0
        %380 = vmatpush2.msra.mxu0 0.0
        %381 = vmatprep.subr.mxu0 0.0
        %382 = vmatpush2.msra.mxu0 0.0
        %383 = vmatprep.subr.mxu0 0.0
        %384 = vmatpush2.msra.mxu0 0.0
        %385 = vmatprep.subr.mxu0 0.0
        %386 = vmatpush2.msra.mxu0 0.0
        %387 = vmatprep.subr.mxu0 0.0
        %388 = vmatpush2.msra.mxu0 0.0
        %389 = vmatprep.subr.mxu0 0.0
        %390 = vmatpush2.msra.mxu0 0.0
        %391 = vmatprep.mubr.f32.mxu0 0.0
        %392 = vmatmul.mubr.f32.gmra.mxu0 %v325
        %v393 = vpop.f32.mrf.mxu0
        %v394 = vadd.f32 0.0, %v393
        %v395 = vpop.f32.mrf.mxu0
        %396 = vdwg.mxu0
        %v397 = vld [vmem:[#allocation8] sm:$0xff]
        %v398 = vld [vmem:[#allocation8 + $0x8] sm:$0xff]
        %v399 = vld [vmem:[#allocation8 + $0x10] sm:$0xff]
        %v400 = vld [vmem:[#allocation8 + $0x18] sm:$0xff]
        %v402 = vsel %vm323, %v311, 0
        %v405 = vsel %vm323, %v312, 0
        %v408 = vsel %vm323, %v313, 0
        %v411 = vsel %vm323, %v314, 0
        %v414 = vsel %vm323, %v315, 0
        %v417 = vsel %vm323, %v316, 0
        %v420 = vsel %vm323, %v317, 0
        %v423 = vsel %vm323, %v318, 0
        %425 = vmatprep.subr.mxu0 0.0
        %426 = vmatpush1.msra.mxu0 0.0
        %427 = vmatprep.subr.mxu0 0.0
        %428 = vmatpush1.msra.mxu0 0.0
        %429 = vmatprep.subr.mxu0 0.0
        %430 = vmatpush1.msra.mxu0 0.0
        %431 = vmatprep.subr.mxu0 0.0
        %432 = vmatpush1.msra.mxu0 0.0
        %433 = vmatprep.subr.mxu0 0.0
        %434 = vmatpush1.msra.mxu0 0.0
        %435 = vmatprep.subr.mxu0 0.0
        %436 = vmatpush1.msra.mxu0 0.0
        %437 = vmatprep.subr.mxu0 0.0
        %438 = vmatpush1.msra.mxu0 0.0
        %439 = vmatprep.subr.mxu0 0.0
        %440 = vmatpush1.msra.mxu0 0.0
        %441 = vmatprep.subr.mxu0 0.0
        %442 = vmatpush1.msra.mxu0 0.0
        %443 = vmatprep.subr.mxu0 0.0
        %444 = vmatpush1.msra.mxu0 0.0
        %445 = vmatprep.subr.mxu0 0.0
        %446 = vmatpush1.msra.mxu0 0.0
        %447 = vmatprep.subr.mxu0 0.0
        %448 = vmatpush1.msra.mxu0 0.0
        %449 = vmatprep.subr.mxu0 0.0
        %450 = vmatpush1.msra.mxu0 %v400
        %451 = vmatprep.subr.mxu0 0.0
        %452 = vmatpush1.msra.mxu0 %v399
        %453 = vmatprep.subr.mxu0 0.0
        %454 = vmatpush1.msra.mxu0 %v398
        %455 = vmatprep.subr.mxu0 0.0
        %456 = vmatpush1.msra.mxu0 %v397
        %457 = vmatprep.subr.mxu0 0.0
        %458 = vmatpush2.msra.mxu0 0.0
        %459 = vmatprep.subr.mxu0 0.0
        %460 = vmatpush2.msra.mxu0 0.0
        %461 = vmatprep.subr.mxu0 0.0
        %462 = vmatpush2.msra.mxu0 0.0
        %463 = vmatprep.subr.mxu0 0.0
        %464 = vmatpush2.msra.mxu0 0.0
        %465 = vmatprep.subr.mxu0 0.0
        %466 = vmatpush2.msra.mxu0 0.0
        %467 = vmatprep.subr.mxu0 0.0
        %468 = vmatpush2.msra.mxu0 0.0
        %469 = vmatprep.subr.mxu0 0.0
        %470 = vmatpush2.msra.mxu0 0.0
        %471 = vmatprep.subr.mxu0 0.0
        %472 = vmatpush2.msra.mxu0 0.0
        %473 = vmatprep.subr.mxu0 0.0
        %474 = vmatpush2.msra.mxu0 0.0
        %475 = vmatprep.subr.mxu0 0.0
        %476 = vmatpush2.msra.mxu0 0.0
        %477 = vmatprep.subr.mxu0 0.0
        %478 = vmatpush2.msra.mxu0 0.0
        %479 = vmatprep.subr.mxu0 0.0
        %480 = vmatpush2.msra.mxu0 0.0
        %481 = vmatprep.subr.mxu0 0.0
        %482 = vmatpush2.msra.mxu0 0.0
        %483 = vmatprep.subr.mxu0 0.0
        %484 = vmatpush2.msra.mxu0 0.0
        %485 = vmatprep.subr.mxu0 0.0
        %486 = vmatpush2.msra.mxu0 0.0
        %487 = vmatprep.subr.mxu0 0.0
        %488 = vmatpush2.msra.mxu0 0.0
        %489 = vmatprep.mubr.f32.mxu0 0.0
        %490 = vmatmul.mubr.f32.gmra.mxu0 %v402
        %v491 = vpop.f32.mrf.mxu0
        %v492 = vadd.f32 0.0, %v491
        %v493 = vpop.f32.mrf.mxu0
        %494 = vmatprep.mubr.f32.mxu0 0.0
        %495 = vmatmul.mubr.f32.gmra.mxu0 %v405
        %v496 = vpop.f32.mrf.mxu0
        %v497 = vadd.f32 0.0, %v496
        %v498 = vpop.f32.mrf.mxu0
        %499 = vmatprep.mubr.f32.mxu0 0.0
        %500 = vmatmul.mubr.f32.gmra.mxu0 %v408
        %v501 = vpop.f32.mrf.mxu0
        %v502 = vadd.f32 0.0, %v501
        %v503 = vpop.f32.mrf.mxu0
        %504 = vmatprep.mubr.f32.mxu0 0.0
        %505 = vmatmul.mubr.f32.gmra.mxu0 %v411
        %v506 = vpop.f32.mrf.mxu0
        %v507 = vadd.f32 0.0, %v506
        %v508 = vpop.f32.mrf.mxu0
        %509 = vmatprep.mubr.f32.mxu0 0.0
        %510 = vmatmul.mubr.f32.gmra.mxu0 %v414
        %v511 = vpop.f32.mrf.mxu0
        %v512 = vadd.f32 0.0, %v511
        %v513 = vpop.f32.mrf.mxu0
        %514 = vmatprep.mubr.f32.mxu0 0.0
        %515 = vmatmul.mubr.f32.gmra.mxu0 %v417
        %v516 = vpop.f32.mrf.mxu0
        %v517 = vadd.f32 0.0, %v516
        %v518 = vpop.f32.mrf.mxu0
        %519 = vmatprep.mubr.f32.mxu0 0.0
        %520 = vmatmul.mubr.f32.gmra.mxu0 %v420
        %v521 = vpop.f32.mrf.mxu0
        %v522 = vadd.f32 0.0, %v521
        %v523 = vpop.f32.mrf.mxu0
        %524 = vmatprep.mubr.f32.mxu0 0.0
        %525 = vmatmul.mubr.f32.gmra.mxu0 %v423
        %v526 = vpop.f32.mrf.mxu0
        %v527 = vadd.f32 0.0, %v526
        %v528 = vpop.f32.mrf.mxu0
        %529 = vdwg.mxu0
        %v531 = vcombine.high %v394, %v394
        %v533 = vunpack.c.l.s4 1966171168
        %v534 = vunpack.c.0.s8 %v533
        %v535 = vlaneseq
        %v536 = vshrl.u32 %v535, 7
        %v537 = vsub.s32 %v534, %v536
        %v538 = vrot.slane %v394, %v537
        %v540 = vunpack.c.l.s4 1966171168
        %v541 = vunpack.c.0.s8 %v540
        %v542 = vlaneseq
        %v543 = vshrl.u32 %v542, 7
        %v544 = vsub.s32 %v541, %v543
        %v545 = vrot.slane %v531, %v544
        %v546 = vcombine.high %v538, %v538
        %v547 = vcombine.high %v545, %v545
        %v549 = vunpack.c.l.s4 1966171168
        %v550 = vunpack.c.0.s8 %v549
        %v551 = vlaneseq
        %v552 = vshrl.u32 %v551, 7
        %v553 = vsub.s32 %v550, %v552
        %v554 = vrot.slane %v538, %v553
        %v556 = vunpack.c.l.s4 1966171168
        %v557 = vunpack.c.0.s8 %v556
        %v558 = vlaneseq
        %v559 = vshrl.u32 %v558, 7
        %v560 = vsub.s32 %v557, %v559
        %v561 = vrot.slane %v545, %v560
        %v563 = vunpack.c.l.s4 1966171168
        %v564 = vunpack.c.0.s8 %v563
        %v565 = vlaneseq
        %v566 = vshrl.u32 %v565, 7
        %v567 = vsub.s32 %v564, %v566
        %v568 = vrot.slane %v546, %v567
        %v570 = vunpack.c.l.s4 1966171168
        %v571 = vunpack.c.0.s8 %v570
        %v572 = vlaneseq
        %v573 = vshrl.u32 %v572, 7
        %v574 = vsub.s32 %v571, %v573
        %v575 = vrot.slane %v547, %v574
        %v576 = vcombine.high %v554, %v554
        %v577 = vcombine.high %v561, %v561
        %v578 = vcombine.high %v568, %v568
        %v579 = vcombine.high %v575, %v575
        %v580 = vlaneseq
        %v581 = vshrl.u32 %v580, 7
        %v582 = vsub.s32 0, %v581
        %v583 = vrot.slane %v554, %v582
        %v584 = vlaneseq
        %v585 = vshrl.u32 %v584, 7
        %v586 = vsub.s32 0, %v585
        %v587 = vrot.slane %v568, %v586
        %v588 = vlaneseq
        %v589 = vshrl.u32 %v588, 7
        %v590 = vsub.s32 0, %v589
        %v591 = vrot.slane %v576, %v590
        %v592 = vlaneseq
        %v593 = vshrl.u32 %v592, 7
        %v594 = vsub.s32 0, %v593
        %v595 = vrot.slane %v578, %v594
        %v596 = vlaneseq
        %v597 = vshrl.u32 %v596, 7
        %v598 = vsub.s32 0, %v597
        %v599 = vrot.slane %v561, %v598
        %v600 = vlaneseq
        %v601 = vshrl.u32 %v600, 7
        %v602 = vsub.s32 0, %v601
        %v603 = vrot.slane %v575, %v602
        %v604 = vlaneseq
        %v605 = vshrl.u32 %v604, 7
        %v606 = vsub.s32 0, %v605
        %v607 = vrot.slane %v577, %v606
        %v608 = vlaneseq
        %v609 = vshrl.u32 %v608, 7
        %v610 = vsub.s32 0, %v609
        %v611 = vrot.slane %v579, %v610
        %v620 = vadd.f32 %v583, %v492
        %v621 = vadd.f32 %v587, %v497
        %v622 = vadd.f32 %v591, %v502
        %v623 = vadd.f32 %v595, %v507
        %v624 = vadd.f32 %v599, %v512
        %v625 = vadd.f32 %v603, %v517
        %v626 = vadd.f32 %v607, %v522
        %v627 = vadd.f32 %v611, %v527
        %v628 = vtanh.pop %v620
        %v629 = vtanh.pop %v621
        %v630 = vtanh.pop %v622
        %v631 = vtanh.pop %v623
        %v632 = vtanh.pop %v624
        %v633 = vtanh.pop %v625
        %v634 = vtanh.pop %v626
        %v635 = vtanh.pop %v627
        %v636 = vld [vmem:[%s4] sm:$0x1]
        %v638 = vlaneseq
        %v639 = vshrl.u32 %v638, 7
        %v640 = vsub.s32 0, %v639
        %v641 = vrot.slane %v636, %v640
        %v643 = vmul.f32 %v628, %v641
        %v644 = vmul.f32 %v629, %v641
        %v645 = vmul.f32 %v630, %v641
        %v646 = vmul.f32 %v631, %v641
        %v647 = vmul.f32 %v632, %v641
        %v648 = vmul.f32 %v633, %v641
        %v649 = vmul.f32 %v634, %v641
        %v650 = vmul.f32 %v635, %v641
        %v651 = vsel %vm323, %v643, 0.0
        %652 = vadd.xlane.f32.xlu0 %v651
        %v653 = vpop.xlane.xlu0 %652
        %v654 = vsel %vm323, %v644, 0.0
        %655 = vadd.xlane.f32.xlu0 %v654
        %v656 = vpop.xlane.xlu0 %655
        %v657 = vsel %vm323, %v645, 0.0
        %658 = vadd.xlane.f32.xlu0 %v657
        %v659 = vpop.xlane.xlu0 %658
        %v660 = vsel %vm323, %v646, 0.0
        %661 = vadd.xlane.f32.xlu0 %v660
        %v662 = vpop.xlane.xlu0 %661
        %v663 = vsel %vm323, %v647, 0.0
        %664 = vadd.xlane.f32.xlu0 %v663
        %v665 = vpop.xlane.xlu0 %664
        %v666 = vsel %vm323, %v648, 0.0
        %667 = vadd.xlane.f32.xlu0 %v666
        %v668 = vpop.xlane.xlu0 %667
        %v669 = vsel %vm323, %v649, 0.0
        %670 = vadd.xlane.f32.xlu0 %v669
        %v671 = vpop.xlane.xlu0 %670
        %v672 = vsel %vm323, %v650, 0.0
        %673 = vadd.xlane.f32.xlu0 %v672
        %v674 = vpop.xlane.xlu0 %673
        %v675 = vrot.slane %v653, 4
        %v676 = vmax.f32 %v653, %v675
        %v677 = vrot.slane %v676, 2
        %v678 = vmax.f32 %v676, %v677
        %v679 = vrot.slane %v678, 1
        %v680 = vmax.f32 %v678, %v679
        %v681 = vrot.slane %v656, 4
        %v682 = vmax.f32 %v656, %v681
        %v683 = vrot.slane %v682, 2
        %v684 = vmax.f32 %v682, %v683
        %v685 = vrot.slane %v684, 1
        %v686 = vmax.f32 %v684, %v685
        %v687 = vrot.slane %v659, 4
        %v688 = vmax.f32 %v659, %v687
        %v689 = vrot.slane %v688, 2
        %v690 = vmax.f32 %v688, %v689
        %v691 = vrot.slane %v690, 1
        %v692 = vmax.f32 %v690, %v691
        %v693 = vrot.slane %v662, 4
        %v694 = vmax.f32 %v662, %v693
        %v695 = vrot.slane %v694, 2
        %v696 = vmax.f32 %v694, %v695
        %v697 = vrot.slane %v696, 1
        %v698 = vmax.f32 %v696, %v697
        %v699 = vrot.slane %v665, 4
        %v700 = vmax.f32 %v665, %v699
        %v701 = vrot.slane %v700, 2
        %v702 = vmax.f32 %v700, %v701
        %v703 = vrot.slane %v702, 1
        %v704 = vmax.f32 %v702, %v703
        %v705 = vrot.slane %v668, 4
        %v706 = vmax.f32 %v668, %v705
        %v707 = vrot.slane %v706, 2
        %v708 = vmax.f32 %v706, %v707
        %v709 = vrot.slane %v708, 1
        %v710 = vmax.f32 %v708, %v709
        %v711 = vrot.slane %v671, 4
        %v712 = vmax.f32 %v671, %v711
        %v713 = vrot.slane %v712, 2
        %v714 = vmax.f32 %v712, %v713
        %v715 = vrot.slane %v714, 1
        %v716 = vmax.f32 %v714, %v715
        %v717 = vrot.slane %v674, 4
        %v718 = vmax.f32 %v674, %v717
        %v719 = vrot.slane %v718, 2
        %v720 = vmax.f32 %v718, %v719
        %v721 = vrot.slane %v720, 1
        %v722 = vmax.f32 %v720, %v721
        %v723 = vsub.f32 %v653, %v680
        %v724 = vsub.f32 %v656, %v686
        %v725 = vsub.f32 %v659, %v692
        %v726 = vsub.f32 %v662, %v698
        %v727 = vsub.f32 %v665, %v704
        %v728 = vsub.f32 %v668, %v710
        %v729 = vsub.f32 %v671, %v716
        %v730 = vsub.f32 %v674, %v722
        %v731 = vmul.f32 %v723, 1.442695
        %v732 = vpow.pop %v731
        %v733 = vmul.f32 %v724, 1.442695
        %v734 = vpow.pop %v733
        %v735 = vmul.f32 %v725, 1.442695
        %v736 = vpow.pop %v735
        %v737 = vmul.f32 %v726, 1.442695
        %v738 = vpow.pop %v737
        %v739 = vmul.f32 %v727, 1.442695
        %v740 = vpow.pop %v739
        %v741 = vmul.f32 %v728, 1.442695
        %v742 = vpow.pop %v741
        %v743 = vmul.f32 %v729, 1.442695
        %v744 = vpow.pop %v743
        %v745 = vmul.f32 %v730, 1.442695
        %v746 = vpow.pop %v745
        %v747 = vrot.slane %v732, 4
        %v748 = vadd.f32 %v732, %v747
        %v749 = vrot.slane %v748, 2
        %v750 = vadd.f32 %v748, %v749
        %v751 = vrot.slane %v750, 1
        %v752 = vadd.f32 %v750, %v751
        %v753 = vrot.slane %v734, 4
        %v754 = vadd.f32 %v734, %v753
        %v755 = vrot.slane %v754, 2
        %v756 = vadd.f32 %v754, %v755
        %v757 = vrot.slane %v756, 1
        %v758 = vadd.f32 %v756, %v757
        %v759 = vrot.slane %v736, 4
        %v760 = vadd.f32 %v736, %v759
        %v761 = vrot.slane %v760, 2
        %v762 = vadd.f32 %v760, %v761
        %v763 = vrot.slane %v762, 1
        %v764 = vadd.f32 %v762, %v763
        %v765 = vrot.slane %v738, 4
        %v766 = vadd.f32 %v738, %v765
        %v767 = vrot.slane %v766, 2
        %v768 = vadd.f32 %v766, %v767
        %v769 = vrot.slane %v768, 1
        %v770 = vadd.f32 %v768, %v769
        %v771 = vrot.slane %v740, 4
        %v772 = vadd.f32 %v740, %v771
        %v773 = vrot.slane %v772, 2
        %v774 = vadd.f32 %v772, %v773
        %v775 = vrot.slane %v774, 1
        %v776 = vadd.f32 %v774, %v775
        %v777 = vrot.slane %v742, 4
        %v778 = vadd.f32 %v742, %v777
        %v779 = vrot.slane %v778, 2
        %v780 = vadd.f32 %v778, %v779
        %v781 = vrot.slane %v780, 1
        %v782 = vadd.f32 %v780, %v781
        %v783 = vrot.slane %v744, 4
        %v784 = vadd.f32 %v744, %v783
        %v785 = vrot.slane %v784, 2
        %v786 = vadd.f32 %v784, %v785
        %v787 = vrot.slane %v786, 1
        %v788 = vadd.f32 %v786, %v787
        %v789 = vrot.slane %v746, 4
        %v790 = vadd.f32 %v746, %v789
        %v791 = vrot.slane %v790, 2
        %v792 = vadd.f32 %v790, %v791
        %v793 = vrot.slane %v792, 1
        %v794 = vadd.f32 %v792, %v793
        %v795 = vrcp.pop %v752
        %v796 = vrcp.pop %v758
        %v797 = vrcp.pop %v764
        %v798 = vrcp.pop %v770
        %v799 = vrcp.pop %v776
        %v800 = vrcp.pop %v782
        %v801 = vrcp.pop %v788
        %v802 = vrcp.pop %v794
        %v803 = vmul.f32 %v732, %v795
        %v804 = vmul.f32 %v734, %v796
        %v805 = vmul.f32 %v736, %v797
        %v806 = vmul.f32 %v738, %v798
        %v807 = vmul.f32 %v740, %v799
        %v808 = vmul.f32 %v742, %v800
        %v809 = vmul.f32 %v744, %v801
        %v810 = vmul.f32 %v746, %v802
        %v811 = vmul.f32 %v803, %v311
        %v812 = vmul.f32 %v804, %v312
        %v813 = vmul.f32 %v805, %v313
        %v814 = vmul.f32 %v806, %v314
        %v815 = vmul.f32 %v807, %v315
        %v816 = vmul.f32 %v808, %v316
        %v817 = vmul.f32 %v809, %v317
        %v818 = vmul.f32 %v810, %v318
        %v819 = vsel %vm323, %v811, 0.0
        %v820 = vrot.slane %v819, 4
        %v821 = vadd.f32 %v819, %v820
        %v822 = vrot.slane %v821, 2
        %v823 = vadd.f32 %v821, %v822
        %v824 = vrot.slane %v823, 1
        %v825 = vadd.f32 %v823, %v824
        %v826 = vsel %vm323, %v812, 0.0
        %v827 = vrot.slane %v826, 4
        %v828 = vadd.f32 %v826, %v827
        %v829 = vrot.slane %v828, 2
        %v830 = vadd.f32 %v828, %v829
        %v831 = vrot.slane %v830, 1
        %v832 = vadd.f32 %v830, %v831
        %v833 = vsel %vm323, %v813, 0.0
        %v834 = vrot.slane %v833, 4
        %v835 = vadd.f32 %v833, %v834
        %v836 = vrot.slane %v835, 2
        %v837 = vadd.f32 %v835, %v836
        %v838 = vrot.slane %v837, 1
        %v839 = vadd.f32 %v837, %v838
        %v840 = vsel %vm323, %v814, 0.0
        %v841 = vrot.slane %v840, 4
        %v842 = vadd.f32 %v840, %v841
        %v843 = vrot.slane %v842, 2
        %v844 = vadd.f32 %v842, %v843
        %v845 = vrot.slane %v844, 1
        %v846 = vadd.f32 %v844, %v845
        %v847 = vsel %vm323, %v815, 0.0
        %v848 = vrot.slane %v847, 4
        %v849 = vadd.f32 %v847, %v848
        %v850 = vrot.slane %v849, 2
        %v851 = vadd.f32 %v849, %v850
        %v852 = vrot.slane %v851, 1
        %v853 = vadd.f32 %v851, %v852
        %v854 = vsel %vm323, %v816, 0.0
        %v855 = vrot.slane %v854, 4
        %v856 = vadd.f32 %v854, %v855
        %v857 = vrot.slane %v856, 2
        %v858 = vadd.f32 %v856, %v857
        %v859 = vrot.slane %v858, 1
        %v860 = vadd.f32 %v858, %v859
        %v861 = vsel %vm323, %v817, 0.0
        %v862 = vrot.slane %v861, 4
        %v863 = vadd.f32 %v861, %v862
        %v864 = vrot.slane %v863, 2
        %v865 = vadd.f32 %v863, %v864
        %v866 = vrot.slane %v865, 1
        %v867 = vadd.f32 %v865, %v866
        %v868 = vsel %vm323, %v818, 0.0
        %v869 = vrot.slane %v868, 4
        %v870 = vadd.f32 %v868, %v869
        %v871 = vrot.slane %v870, 2
        %v872 = vadd.f32 %v870, %v871
        %v873 = vrot.slane %v872, 1
        %v874 = vadd.f32 %v872, %v873
        %vm883 = vcmask 1041409
        %v884 = vsel %vm883, %v832, %v825
        %vm885 = vcmask 1042434
        %v886 = vsel %vm885, %v839, %v884
        %vm887 = vcmask 1043459
        %v888 = vsel %vm887, %v846, %v886
        %vm889 = vcmask 1044484
        %v890 = vsel %vm889, %v853, %v888
        %vm891 = vcmask 1045509
        %v892 = vsel %vm891, %v860, %v890
        %vm893 = vcmask 1046534
        %v894 = vsel %vm893, %v867, %v892
        %vm895 = vcmask 1047559
        %v896 = vsel %vm895, %v874, %v894
        %898 = vst.msk [vmem:[%s308] sm:$0xff] %vm323, %v896
        %s899 = sand.u32 %s149, 1
        %s900 = scalar_lea.sflag [#allocation4], %s899
        %s901 = sand.u32 %s149, 1
        %s902 = smul.addr %s901, 8
        %s903 = scalar_lea.vmem [#allocation10], %s902
        // Predicated region
        $region57: #{tpu_custom_call.1} parent=39 // pred_check
          %p904 = pneg %p159
        $region58: #{tpu_custom_call.1} parent=39 // pred_check_branch
          %906 = sbr.rel (%p904) target = $region60
        $region59: #{tpu_custom_call.1} parent=39 // pred_region
          %s908 = ssub.s32 128, 128
          %909 = vsyncadd %s900, %s908
          %s910 = smul.addr %s26, 128
          %s911 = scalar_lea.hbm %s5, %s910
          %s913 = sshll.u32 %s903, 4
          %s914 = int_to_ptr.vmem [resolvable:$true] %s913
          %916 = dma.vmem_to_hbm [thread:$0]  %s914, 128, %s911, %s900
        $region60: #{tpu_custom_call.1} parent=39 // pred_fallthru
          _
      $region40: #{tpu_custom_call.1} parent=5 // pred_fallthru
        _
      %p917 = scmp.le.s32.totalorder 2, %s21
      // Predicated region
      $region61: #{tpu_custom_call.1} parent=5 // pred_check
        %p918 = pneg %p917
      $region62: #{tpu_custom_call.1} parent=5 // pred_check_branch
        %920 = sbr.rel (%p918) target = $region64
      $region63: #{tpu_custom_call.1} parent=5 // pred_region
        %s921 = ssub.s32 %s21, 2
        // Predicated region
        $region65: #{tpu_custom_call.1} parent=63 // pred_check
          %p922 = pneg %p165
        $region66: #{tpu_custom_call.1} parent=63 // pred_check_branch
          %924 = sbr.rel (%p922) target = $region68
        $region67: #{tpu_custom_call.1} parent=63 // pred_region
          %s925 = sand.u32 %s150, 1
          %s926 = scalar_lea.sflag [#allocation4], %s925
          %s927 = sand.u32 %s150, 1
          %s928 = smul.addr %s927, 8
          %s929 = scalar_lea.vmem [#allocation10], %s928
          %930 = dma.done %s926, 128
        $region68: #{tpu_custom_call.1} parent=63 // pred_fallthru
          _
      $region64: #{tpu_custom_call.1} parent=5 // pred_fallthru
        _
    $region6: #{tpu_custom_call.1} parent=1 // loop_footer
      %s25 = sadd.s32 1, %s21
    $region7: #{tpu_custom_call.1} parent=1 // loop_footer_branch
      %20 = sbr.rel target = $region3
    $region8: #{tpu_custom_call.1} parent=1 // loop_exit
      _
    %931 = vsyncpa [#allocation3], 1
    %s932 = scalar_lea.sflag [#allocation3], 1
    %933 = vsyncpa %s932, 1
    %934 = vsyncpa [#allocation6], 1
    %s935 = scalar_lea.sflag [#allocation6], 1
    %936 = vsyncpa %s935, 1
    %937 = vsyncpa [#allocation9], 1
    %938 = vsyncpa [#allocation4], 1
    %s939 = scalar_lea.sflag [#allocation4], 1
    %940 = vsyncpa %s939, 1

</llo_original>
